<compile_context>
chip_gen: v7x
topology: tpu7x:2x2x1
jax: 0.10.0
libtpu: 0.0.40
codegen_flags: <defaults>
</compile_context>

<pallas_src>
import jax
import jax.numpy as jnp
from jax.experimental import pallas as pl
from jax.experimental.pallas import tpu as pltpu


def _round_up(x, m):
    return (x + m - 1) // m * m


def _decoder_output_kernel(f_ref, w_ref, b_ref, logits_ref, logz_ref, m_sc, l_sc):
    """Fused output_layer (matmul + bias) with an online logsumexp over vocab tiles.

    Grid: (row_tiles, vocab_tiles); vocab is the innermost ("arbitrary") axis.
    Outputs: per-tile logits (f32) and, on the last vocab step, the per-row
    log-partition logZ = max + log(sum(exp(logits - max))).
    """
    vj = pl.program_id(1)

    @pl.when(vj == 0)
    def _():
        m_sc[...] = jnp.full_like(m_sc, -jnp.inf)
        l_sc[...] = jnp.zeros_like(l_sc)

    # MXU matmul: (TM, E) @ (E, TV) -> (TM, TV), bf16 inputs, f32 accumulate.
    logits = jnp.dot(f_ref[...], w_ref[...], preferred_element_type=jnp.float32)
    logits = logits + b_ref[...].astype(jnp.float32)   # broadcast (1, TV) over rows

    # Store logits first so the vst overlaps the XLU/EUP reduction work below.
    logits_ref[...] = logits.astype(logits_ref.dtype)

    # Online (streaming) max / sum-of-exp across vocab tiles, all in f32.
    m_prev = m_sc[...]
    m_new = jnp.maximum(m_prev, jnp.max(logits, axis=-1, keepdims=True))
    l_sc[...] = (l_sc[...] * jnp.exp(m_prev - m_new)
                 + jnp.sum(jnp.exp(logits - m_new), axis=-1, keepdims=True))
    m_sc[...] = m_new

    @pl.when(vj == pl.num_programs(1) - 1)
    def _():
        logz_ref[...] = (m_sc[...] + jnp.log(l_sc[...])).astype(logz_ref.dtype)


def decoder_forward(prev_output_tokens, embed_table, out_weight, out_bias, *,
                    row_tile=256, vocab_tile=512,
                    compute_dtype=jnp.bfloat16, out_dtype=jnp.float32):
    """
    Args:
      prev_output_tokens: int32 (batch, tgt_len)
      embed_table:        f32   (vocab, embed_dim)
      out_weight:         f32   (embed_dim, vocab)
      out_bias:           f32   (vocab,)
    Returns:
      logits:   (batch, tgt_len, vocab)      -- forward() output
      logprobs: (batch, tgt_len, vocab)      -- get_normalized_probs(log_probs=True)
    """
    B, T = prev_output_tokens.shape
    E, V = out_weight.shape
    M = B * T

    # extract_features: embedding lookup (glue, not the hot path).
    feats = jnp.take(embed_table, prev_output_tokens.reshape(-1), axis=0)   # (M, E)

    # Row tiling: clamp the tile to the (8-aligned) problem size, pad rows if needed.
    tm = min(row_tile, _round_up(M, 8))
    M_pad = _round_up(M, tm)
    if M_pad != M:
        feats = jnp.pad(feats, ((0, M_pad - M), (0, 0)))

    # Vocab tiling: lane-aligned tile that divides V, else fall back to full vocab.
    tv = min(vocab_tile, V)
    if V % tv != 0 or tv % 128 != 0:
        tv = V

    feats = feats.astype(compute_dtype)
    weight = out_weight.astype(compute_dtype)
    bias2d = out_bias.reshape(1, V).astype(jnp.float32)

    grid = (M_pad // tm, V // tv)

    logits_pad, logz_pad = pl.pallas_call(
        _decoder_output_kernel,
        out_shape=(
            jax.ShapeDtypeStruct((M_pad, V), out_dtype),     # logits
            jax.ShapeDtypeStruct((M_pad, 1), jnp.float32),   # logZ sidecar
        ),
        grid_spec=pltpu.PrefetchScalarGridSpec(
            num_scalar_prefetch=0,
            grid=grid,
            in_specs=[
                pl.BlockSpec((tm, E), lambda i, j: (i, 0)),   # feature tile (resident over j)
                pl.BlockSpec((E, tv), lambda i, j: (0, j)),   # weight tile (streamed over vocab)
                pl.BlockSpec((1, tv), lambda i, j: (0, j)),   # bias tile
            ],
            out_specs=[
                pl.BlockSpec((tm, tv), lambda i, j: (i, j)),  # logits tile
                pl.BlockSpec((tm, 1), lambda i, j: (i, 0)),   # logZ (resident over j, P3 pattern)
            ],
            scratch_shapes=[
                pltpu.VMEM((tm, 1), jnp.float32),   # running max
                pltpu.VMEM((tm, 1), jnp.float32),   # running sum of exp
            ],
        ),
        compiler_params=pltpu.CompilerParams(
            dimension_semantics=("parallel", "arbitrary"),
            vmem_limit_bytes=48 * 1024 * 1024,
        ),
    )(feats, weight, bias2d)

    logits = logits_pad[:M]
    logz = logz_pad[:M]
    # get_normalized_probs(log_probs=True): cheap broadcast subtract in XLA.
    logprobs = logits.astype(jnp.float32) - logz

    return logits.reshape(B, T, V), logprobs.reshape(B, T, V)


def reference_forward(prev_output_tokens, embed_table, out_weight, out_bias):
    """Pure-JAX f32 reference of the same forward semantics."""
    feats = jnp.take(embed_table, prev_output_tokens, axis=0)          # (B, T, E)
    logits = jnp.einsum("bte,ev->btv", feats, out_weight) + out_bias   # (B, T, V)
    logprobs = jax.nn.log_softmax(logits, axis=-1)
    return logits, logprobs


if __name__ == "__main__":
    # Small shapes consistent with the decoder interface; chosen so that the demo
    # exercises row padding (M=24 -> 32), multiple row tiles and multiple vocab tiles
    # (i.e. the online log-softmax path).
    batch, tgt_len, embed_dim, vocab = 2, 12, 64, 256

    key = jax.random.PRNGKey(0)
    k_tok, k_emb, k_w, k_b = jax.random.split(key, 4)

    prev_output_tokens = jax.random.randint(
        k_tok, (batch, tgt_len), minval=0, maxval=vocab, dtype=jnp.int32)
    embed_table = jax.random.normal(k_emb, (vocab, embed_dim), dtype=jnp.float32) * 0.02
    out_weight = jax.random.normal(k_w, (embed_dim, vocab), dtype=jnp.float32) * 0.02
    out_bias = jax.random.normal(k_b, (vocab,), dtype=jnp.float32) * 0.01

    # Small tiles here purely to exercise the tiled/online-softmax code path at toy
    # shapes; production defaults are row_tile=256 / vocab_tile=512.
    logits, logprobs = decoder_forward(
        prev_output_tokens, embed_table, out_weight, out_bias,
        row_tile=16, vocab_tile=128)
    jax.block_until_ready((logits, logprobs))

    ref_logits, ref_logprobs = reference_forward(
        prev_output_tokens, embed_table, out_weight, out_bias)

    assert logits.shape == (batch, tgt_len, vocab)
    assert logprobs.shape == (batch, tgt_len, vocab)
    # bf16 MXU inputs -> compare against the f32 reference with bf16-appropriate tolerance.
    assert jnp.allclose(logits, ref_logits, atol=1e-2, rtol=1e-2), (
        float(jnp.max(jnp.abs(logits - ref_logits))))
    assert jnp.allclose(logprobs, ref_logprobs, atol=1e-2, rtol=1e-2), (
        float(jnp.max(jnp.abs(logprobs - ref_logprobs))))

    print("KERNEL_OK")
</pallas_src>

<mosaic_0001>
module attributes {stable_mosaic.version = 11 : i64} {
  func.func @_decoder_output_kernel(%arg0: i32, %arg1: i32, %arg2: memref<16x64xbf16, #tpu.memory_space<vmem>>, %arg3: memref<64x128xbf16, #tpu.memory_space<vmem>>, %arg4: memref<1x128xf32, #tpu.memory_space<vmem>>, %arg5: memref<16x128xf32, #tpu.memory_space<vmem>>, %arg6: memref<16x1xf32, #tpu.memory_space<vmem>>, %arg7: memref<16x1xf32, #tpu.memory_space<vmem>>, %arg8: memref<16x1xf32, #tpu.memory_space<vmem>>) attributes {dimension_semantics = [#tpu.dimension_semantics<parallel>, #tpu.dimension_semantics<arbitrary>], iteration_bounds = array<i64: 2, 2>, scalar_prefetch = 0 : i64, scratch_operands = 2 : i64, tpu.core_type = #tpu.core_type<tc>, window_params = [{transform_indices = @transform_0, window_bounds = array<i64: 16, 64>}, {transform_indices = @transform_1, window_bounds = array<i64: 64, 128>}, {transform_indices = @transform_2, window_bounds = array<i64: 1, 128>}, {transform_indices = @transform_3, window_bounds = array<i64: 16, 128>}, {transform_indices = @transform_4, window_bounds = array<i64: 16, 1>}]} {
    %c0_i32 = arith.constant 0 : i32
    %0 = arith.cmpi eq, %arg1, %c0_i32 : i32
    %1 = arith.extui %0 : i1 to i32
    %c0_i32_0 = arith.constant 0 : i32
    %2 = arith.cmpi ne, %1, %c0_i32_0 : i32
    scf.if %2 {
      %cst_19 = arith.constant 0xFF800000 : f32
      %29 = vector.broadcast %cst_19 : f32 to vector<16x1xf32>
      %c0_20 = arith.constant 0 : index
      %c0_21 = arith.constant 0 : index
      %30 = vector.load %arg7[%c0_20, %c0_21] : memref<16x1xf32, #tpu.memory_space<vmem>>, vector<16x1xf32>
      tpu.vector_store %arg7[%c0_20, %c0_21], %29 {strides = array<i32>} : memref<16x1xf32, #tpu.memory_space<vmem>>, vector<16x1xf32>,
      %cst_22 = arith.constant 0.000000e+00 : f32
      %31 = vector.broadcast %cst_22 : f32 to vector<16x1xf32>
      %c0_23 = arith.constant 0 : index
      %c0_24 = arith.constant 0 : index
      %32 = vector.load %arg8[%c0_23, %c0_24] : memref<16x1xf32, #tpu.memory_space<vmem>>, vector<16x1xf32>
      tpu.vector_store %arg8[%c0_23, %c0_24], %31 {strides = array<i32>} : memref<16x1xf32, #tpu.memory_space<vmem>>, vector<16x1xf32>,
    } else {
    }
    %c0 = arith.constant 0 : index
    %c0_1 = arith.constant 0 : index
    %3 = vector.load %arg2[%c0, %c0_1] : memref<16x64xbf16, #tpu.memory_space<vmem>>, vector<16x64xbf16>
    %c0_2 = arith.constant 0 : index
    %c0_3 = arith.constant 0 : index
    %4 = vector.load %arg3[%c0_2, %c0_3] : memref<64x128xbf16, #tpu.memory_space<vmem>>, vector<64x128xbf16>
    %cst = arith.constant dense<0.000000e+00> : vector<16x128xf32>
    %5 = tpu.matmul %3, %4, %cst {dimension_numbers = #tpu.dot_dimension_numbers<[1], [0], [0], [1], [0, 0, 1, 1], [], []>} : vector<16x64xbf16>, vector<64x128xbf16>, vector<16x128xf32> -> vector<16x128xf32>
    %c0_4 = arith.constant 0 : index
    %c0_5 = arith.constant 0 : index
    %6 = vector.load %arg4[%c0_4, %c0_5] : memref<1x128xf32, #tpu.memory_space<vmem>>, vector<1x128xf32>
    %7 = vector.broadcast %6 : vector<1x128xf32> to vector<16x128xf32>
    %8 = arith.addf %5, %7 : vector<16x128xf32>
    %c0_6 = arith.constant 0 : index
    %c0_7 = arith.constant 0 : index
    %9 = vector.load %arg5[%c0_6, %c0_7] : memref<16x128xf32, #tpu.memory_space<vmem>>, vector<16x128xf32>
    tpu.vector_store %arg5[%c0_6, %c0_7], %8 {strides = array<i32>} : memref<16x128xf32, #tpu.memory_space<vmem>>, vector<16x128xf32>,
    %c0_8 = arith.constant 0 : index
    %c0_9 = arith.constant 0 : index
    %10 = vector.load %arg7[%c0_8, %c0_9] : memref<16x1xf32, #tpu.memory_space<vmem>>, vector<16x1xf32>
    %cst_10 = arith.constant dense<0xFF800000> : vector<16xf32>
    %11 = vector.multi_reduction <maximumf>, %8, %cst_10 [1] : vector<16x128xf32> to vector<16xf32>
    %12 = vector.shape_cast %11 : vector<16xf32> to vector<16x1xf32>
    %13 = arith.maximumf %10, %12 : vector<16x1xf32>
    %c0_11 = arith.constant 0 : index
    %c0_12 = arith.constant 0 : index
    %14 = vector.load %arg8[%c0_11, %c0_12] : memref<16x1xf32, #tpu.memory_space<vmem>>, vector<16x1xf32>
    %15 = arith.subf %10, %13 : vector<16x1xf32>
    %16 = math.exp %15 : vector<16x1xf32>
    %17 = arith.mulf %14, %16 : vector<16x1xf32>
    %18 = vector.broadcast %13 : vector<16x1xf32> to vector<16x128xf32>
    %19 = arith.subf %8, %18 : vector<16x128xf32>
    %20 = math.exp %19 : vector<16x128xf32>
    %cst_13 = arith.constant dense<0.000000e+00> : vector<16xf32>
    %21 = vector.multi_reduction <add>, %20, %cst_13 [1] : vector<16x128xf32> to vector<16xf32>
    %22 = vector.shape_cast %21 : vector<16xf32> to vector<16x1xf32>
    %23 = arith.addf %17, %22 : vector<16x1xf32>
    %c0_14 = arith.constant 0 : index
    %c0_15 = arith.constant 0 : index
    %24 = vector.load %arg8[%c0_14, %c0_15] : memref<16x1xf32, #tpu.memory_space<vmem>>, vector<16x1xf32>
    tpu.vector_store %arg8[%c0_14, %c0_15], %23 {strides = array<i32>} : memref<16x1xf32, #tpu.memory_space<vmem>>, vector<16x1xf32>,
    %c0_16 = arith.constant 0 : index
    %c0_17 = arith.constant 0 : index
    %25 = vector.load %arg7[%c0_16, %c0_17] : memref<16x1xf32, #tpu.memory_space<vmem>>, vector<16x1xf32>
    tpu.vector_store %arg7[%c0_16, %c0_17], %13 {strides = array<i32>} : memref<16x1xf32, #tpu.memory_space<vmem>>, vector<16x1xf32>,
    %c1_i32 = arith.constant 1 : i32
    %26 = arith.cmpi eq, %arg1, %c1_i32 : i32
    %27 = arith.extui %26 : i1 to i32
    %c0_i32_18 = arith.constant 0 : i32
    %28 = arith.cmpi ne, %27, %c0_i32_18 : i32
    scf.if %28 {
      %c0_19 = arith.constant 0 : index
      %c0_20 = arith.constant 0 : index
      %29 = vector.load %arg7[%c0_19, %c0_20] : memref<16x1xf32, #tpu.memory_space<vmem>>, vector<16x1xf32>
      %c0_21 = arith.constant 0 : index
      %c0_22 = arith.constant 0 : index
      %30 = vector.load %arg8[%c0_21, %c0_22] : memref<16x1xf32, #tpu.memory_space<vmem>>, vector<16x1xf32>
      %31 = math.log %30 : vector<16x1xf32>
      %32 = arith.addf %29, %31 : vector<16x1xf32>
      %c0_23 = arith.constant 0 : index
      %c0_24 = arith.constant 0 : index
      %33 = vector.load %arg6[%c0_23, %c0_24] : memref<16x1xf32, #tpu.memory_space<vmem>>, vector<16x1xf32>
      tpu.vector_store %arg6[%c0_23, %c0_24], %32 {strides = array<i32>} : memref<16x1xf32, #tpu.memory_space<vmem>>, vector<16x1xf32>,
    } else {
    }
    return
  }
  func.func @transform_0(%arg0: i32, %arg1: i32) -> (i32, i32) {
    %c0_i32 = arith.constant 0 : i32
    %c0_i32_0 = arith.constant 0 : i32
    return %arg0, %c0_i32 : i32, i32
  }
  func.func @transform_1(%arg0: i32, %arg1: i32) -> (i32, i32) {
    %c0_i32 = arith.constant 0 : i32
    %c0_i32_0 = arith.constant 0 : i32
    return %c0_i32, %arg1 : i32, i32
  }
  func.func @transform_2(%arg0: i32, %arg1: i32) -> (i32, i32) {
    %c0_i32 = arith.constant 0 : i32
    %c0_i32_0 = arith.constant 0 : i32
    return %c0_i32, %arg1 : i32, i32
  }
  func.func @transform_3(%arg0: i32, %arg1: i32) -> (i32, i32) {
    %c0_i32 = arith.constant 0 : i32
    return %arg0, %arg1 : i32, i32
  }
  func.func @transform_4(%arg0: i32, %arg1: i32) -> (i32, i32) {
    %c0_i32 = arith.constant 0 : i32
    %c0_i32_0 = arith.constant 0 : i32
    return %arg0, %c0_i32 : i32, i32
  }
}

</mosaic_0001>

<llo_original>
// kernel: tpu_custom_call.1
$region0: #{tpu_custom_call.1}
  #allocation0 [shape = 'u32[]', space=smem, size = 0x4, offset = 0x4, fixed_abs, tag = 'smem constant byte address 0x4 - core index']
  #allocation1 [shape = 'u32[144,128]{1,0:T(1,128)}', space=vmem, size = 0x12000, scoped, tag = 'internal scratch']
  #allocation2 [shape = 'f32[16,1]{1,0:T(8,128)}', space=vmem, size = 0x2000, scoped, tag = 'scratch operand']
  #allocation3 [shape = 'f32[16,1]{1,0:T(8,128)}', space=vmem, size = 0x2000, scoped, tag = 'scratch operand']
  %s0 = inlined_call_operand.hbm [shape: bf16[32,64], index: 0, kind: input, shape index: {}]
  %s1 = inlined_call_operand.hbm [shape: bf16[64,256], index: 1, kind: input, shape index: {}]
  %s2 = inlined_call_operand.vmem [shape: f32[1,256], index: 2, kind: input, shape index: {}]
  %s3 = inlined_call_operand.hbm [shape: f32[32,256], index: 3, kind: output, shape index: {0}]
  %s4 = inlined_call_operand.vmem [shape: f32[32,1], index: 4, kind: output, shape index: {1}]
  %5 = xla_tuple %s3, %s4
  %s6 = sld [smem:[#allocation0]]
  $region69: #{tpu_custom_call.1} parent=0
    _
  %s8 = ssub.s32 1, %s6
  %s9 = scalar_select 0, %s8, %s6
  $region1: #{tpu_custom_call.1} parent=0
    #allocation4 [shape = 'u8[8192]{0}', space=vmem, size = 0x2000, scoped, tag = 'input window, operand 0']
    #allocation5 [shape = 's32[2]{0}', space=sflag, size = 0x8, scoped, tag = 'scoped memory for tpu_custom_call.1']
    #allocation6 [shape = 's32[2]{0}', space=sflag, size = 0x8, scoped, tag = 'scoped memory for tpu_custom_call.1']
    #allocation7 [shape = 'u8[32768]{0}', space=vmem, size = 0x8000, scoped, tag = 'input window, operand 1']
    #allocation8 [shape = 's32[2]{0}', space=sflag, size = 0x8, scoped, tag = 'scoped memory for tpu_custom_call.1']
    #allocation9 [shape = 'u8[16384]{0}', space=vmem, size = 0x4000, scoped, tag = 'output window, operand 0']
    %10 = vsyncpa [#allocation5], 0
    %s11 = scalar_lea.sflag [#allocation5], 1
    %12 = vsyncpa %s11, 0
    %13 = vsyncpa [#allocation8], 0
    %s14 = scalar_lea.sflag [#allocation8], 1
    %15 = vsyncpa %s14, 0
    %16 = vsyncpa [#allocation6], 0
    %s17 = scalar_lea.sflag [#allocation6], 1
    %18 = vsyncpa %s17, 0
    loop: start=0, step=1, limit=6
    $region2: #{tpu_custom_call.1} parent=1 // loop_pre_header
      _
    $region3: #{tpu_custom_call.1} parent=1 // loop_header
      %s20 = sphi 0, %s24
      %p21 = scmp.ge.s32.totalorder %s20, 6
      %s27 = sphi 0, %s39
      %s28 = sphi 0, %s35
      %s29 = sphi 0, %s27
      %s30 = sphi 0, %s28
      %s31 = sphi 0, %s29
      %s32 = sphi 0, %s30
      %s42 = sphi 0, %s44
      %s45 = sphi 0, %s42
      %s46 = sphi 0, %s45
      %s62 = sphi 0, %s46
      %s68 = sphi 0, %s70
      %s71 = sphi 0, %s68
      %s72 = sphi 0, %s71
      %s88 = sphi 0, %s72
      %s94 = sphi 0, %s96
      %s97 = sphi 0, %s94
      %s98 = sphi 0, %s97
      %s114 = sphi 0, %s98
      %s122 = sphi 0, %s124
      %s125 = sphi 0, %s122
      %s126 = sphi 0, %s125
      %s142 = sphi 0, %s126
      %s148 = sphi 0, %s150
      %s151 = sphi 0, %s148
      %s152 = sphi 0, %s151
      %s168 = sphi 0, %s152
    $region4: #{tpu_custom_call.1} parent=1 // loop_header_branch
      %23 = sbr.rel (%p21) target = $region8
    $region5: #{tpu_custom_call.1} parent=1 // loop_body
      %s25 = ssub.s32 %s20, 1
      %s26 = ssub.s32 %s20, 2
      %s33 = sadd.s32 1, %s28
      %p34 = scmp.ge.s32.totalorder %s33, 2
      %s35 = scalar_select %p34, 0, %s33
      %s36 = sadd.s32 1, %s27
      %s37 = scalar_select %p34, %s36, %s27
      %p38 = scmp.ge.s32.totalorder %s37, 2
      %s39 = scalar_select %p38, 0, %s37
      %s40 = ssub.s32 %s27, %s39
      %p41 = scmp.eq.s32.totalorder %s40, 0
      %s43 = sadd.s32 %s42, 1
      %s44 = scalar_select %p41, %s42, %s43
      %p47 = pneg %p41
      %p48 = scmp.eq.s32.totalorder %s20, 3
      %p49 = por %p47, %p48
      %p50 = scmp.ne.s32.totalorder %s42, %s45
      %p51 = scmp.eq.s32.totalorder %s20, 0
      %p52 = por %p50, %p51
      %p53 = scmp.ne.s32.totalorder %s42, %s45
      %p54 = scmp.eq.s32.totalorder %s25, 3
      %p55 = por %p53, %p54
      %p56 = scmp.ne.s32.totalorder %s45, %s46
      %p57 = scmp.eq.s32.totalorder %s25, 0
      %p58 = por %p56, %p57
      %p59 = scmp.ne.s32.totalorder %s45, %s46
      %p60 = scmp.eq.s32.totalorder %s26, 3
      %p61 = por %p59, %p60
      %p63 = scmp.ne.s32.totalorder %s46, %s62
      %p64 = scmp.eq.s32.totalorder %s26, 0
      %p65 = por %p63, %p64
      %s66 = ssub.s32 %s28, %s35
      %p67 = scmp.eq.s32.totalorder %s66, 0
      %s69 = sadd.s32 %s68, 1
      %s70 = scalar_select %p67, %s68, %s69
      %p73 = pneg %p67
      %p74 = scmp.eq.s32.totalorder %s20, 3
      %p75 = por %p73, %p74
      %p76 = scmp.ne.s32.totalorder %s68, %s71
      %p77 = scmp.eq.s32.totalorder %s20, 0
      %p78 = por %p76, %p77
      %p79 = scmp.ne.s32.totalorder %s68, %s71
      %p80 = scmp.eq.s32.totalorder %s25, 3
      %p81 = por %p79, %p80
      %p82 = scmp.ne.s32.totalorder %s71, %s72
      %p83 = scmp.eq.s32.totalorder %s25, 0
      %p84 = por %p82, %p83
      %p85 = scmp.ne.s32.totalorder %s71, %s72
      %p86 = scmp.eq.s32.totalorder %s26, 3
      %p87 = por %p85, %p86
      %p89 = scmp.ne.s32.totalorder %s72, %s88
      %p90 = scmp.eq.s32.totalorder %s26, 0
      %p91 = por %p89, %p90
      %s92 = ssub.s32 %s28, %s35
      %p93 = scmp.eq.s32.totalorder %s92, 0
      %s95 = sadd.s32 %s94, 1
      %s96 = scalar_select %p93, %s94, %s95
      %p99 = pneg %p93
      %p100 = scmp.eq.s32.totalorder %s20, 3
      %p101 = por %p99, %p100
      %p102 = scmp.ne.s32.totalorder %s94, %s97
      %p103 = scmp.eq.s32.totalorder %s20, 0
      %p104 = por %p102, %p103
      %p105 = scmp.ne.s32.totalorder %s94, %s97
      %p106 = scmp.eq.s32.totalorder %s25, 3
      %p107 = por %p105, %p106
      %p108 = scmp.ne.s32.totalorder %s97, %s98
      %p109 = scmp.eq.s32.totalorder %s25, 0
      %p110 = por %p108, %p109
      %p111 = scmp.ne.s32.totalorder %s97, %s98
      %p112 = scmp.eq.s32.totalorder %s26, 3
      %p113 = por %p111, %p112
      %p115 = scmp.ne.s32.totalorder %s98, %s114
      %p116 = scmp.eq.s32.totalorder %s26, 0
      %p117 = por %p115, %p116
      %s118 = ssub.s32 %s27, %s39
      %s119 = ssub.s32 %s28, %s35
      %s120 = sor.u32 %s118, %s119
      %p121 = scmp.eq.s32.totalorder %s120, 0
      %s123 = sadd.s32 %s122, 1
      %s124 = scalar_select %p121, %s122, %s123
      %p127 = pneg %p121
      %p128 = scmp.eq.s32.totalorder %s20, 3
      %p129 = por %p127, %p128
      %p130 = scmp.ne.s32.totalorder %s122, %s125
      %p131 = scmp.eq.s32.totalorder %s20, 0
      %p132 = por %p130, %p131
      %p133 = scmp.ne.s32.totalorder %s122, %s125
      %p134 = scmp.eq.s32.totalorder %s25, 3
      %p135 = por %p133, %p134
      %p136 = scmp.ne.s32.totalorder %s125, %s126
      %p137 = scmp.eq.s32.totalorder %s25, 0
      %p138 = por %p136, %p137
      %p139 = scmp.ne.s32.totalorder %s125, %s126
      %p140 = scmp.eq.s32.totalorder %s26, 3
      %p141 = por %p139, %p140
      %p143 = scmp.ne.s32.totalorder %s126, %s142
      %p144 = scmp.eq.s32.totalorder %s26, 0
      %p145 = por %p143, %p144
      %s146 = ssub.s32 %s27, %s39
      %p147 = scmp.eq.s32.totalorder %s146, 0
      %s149 = sadd.s32 %s148, 1
      %s150 = scalar_select %p147, %s148, %s149
      %p153 = pneg %p147
      %p154 = scmp.eq.s32.totalorder %s20, 3
      %p155 = por %p153, %p154
      %p156 = scmp.ne.s32.totalorder %s148, %s151
      %p157 = scmp.eq.s32.totalorder %s20, 0
      %p158 = por %p156, %p157
      %p159 = scmp.ne.s32.totalorder %s148, %s151
      %p160 = scmp.eq.s32.totalorder %s25, 3
      %p161 = por %p159, %p160
      %p162 = scmp.ne.s32.totalorder %s151, %s152
      %p163 = scmp.eq.s32.totalorder %s25, 0
      %p164 = por %p162, %p163
      %p165 = scmp.ne.s32.totalorder %s151, %s152
      %p166 = scmp.eq.s32.totalorder %s26, 3
      %p167 = por %p165, %p166
      %p169 = scmp.ne.s32.totalorder %s152, %s168
      %p170 = scmp.eq.s32.totalorder %s26, 0
      %p171 = por %p169, %p170
      %p172 = scmp.le.s32.totalorder 1, %s20
      %p173 = scmp.lt.s32.totalorder %s20, 5
      %p174 = pnand %p172, %p173
      %p175 = pneg %p174
      // Predicated region
      $region9: #{tpu_custom_call.1} parent=5 // pred_check
        _
      $region10: #{tpu_custom_call.1} parent=5 // pred_check_branch
        %177 = sbr.rel (%p174) target = $region12
      $region11: #{tpu_custom_call.1} parent=5 // pred_region
        %s178 = ssub.s32 %s20, 1
      $region12: #{tpu_custom_call.1} parent=5 // pred_fallthru
        _
      %p179 = scmp.lt.s32.totalorder %s20, 4
      // Predicated region
      $region13: #{tpu_custom_call.1} parent=5 // pred_check
        %p180 = pneg %p179
      $region14: #{tpu_custom_call.1} parent=5 // pred_check_branch
        %182 = sbr.rel (%p180) target = $region16
      $region15: #{tpu_custom_call.1} parent=5 // pred_region
        // Predicated region
        $region17: #{tpu_custom_call.1} parent=15 // pred_check
          %p183 = pneg %p52
        $region18: #{tpu_custom_call.1} parent=15 // pred_check_branch
          %185 = sbr.rel (%p183) target = $region20
        $region19: #{tpu_custom_call.1} parent=15 // pred_region
          %s186 = sand.u32 %s42, 1
          %s187 = scalar_lea.sflag [#allocation5], %s186
          %s188 = sand.u32 %s42, 1
          %s189 = smul.addr %s188, 8
          %s190 = scalar_lea.vmem [#allocation4], %s189
          %s191 = smul.u32 2, %s27
          %s193 = ssub.s32 128, 128
          %194 = vsyncadd %s187, %s193
          %s195 = smul.addr %s191, 64
          %s196 = scalar_lea.hbm %s0, %s195
          %s197 = sshll.u32 %s190, 4
          %s198 = int_to_ptr.vmem [resolvable:$true] %s197
          %203 = dma.hbm_to_vmem [thread:$0]  %s196, 128, %s198, %s187, 64, 64, 4
        $region20: #{tpu_custom_call.1} parent=15 // pred_fallthru
          _
        // Predicated region
        $region21: #{tpu_custom_call.1} parent=15 // pred_check
          %p204 = pneg %p78
        $region22: #{tpu_custom_call.1} parent=15 // pred_check_branch
          %206 = sbr.rel (%p204) target = $region24
        $region23: #{tpu_custom_call.1} parent=15 // pred_region
          %s207 = sand.u32 %s68, 1
          %s208 = scalar_lea.sflag [#allocation8], %s207
          %s209 = sand.u32 %s68, 1
          %s210 = smul.addr %s209, 32
          %s211 = scalar_lea.vmem [#allocation7], %s210
          %s213 = ssub.s32 512, 512
          %214 = vsyncadd %s208, %s213
          %s215 = smul.addr %s28, 64
          %s216 = scalar_lea.hbm %s1, %s215
          %s217 = sshll.u32 %s211, 4
          %s218 = int_to_ptr.vmem [resolvable:$true] %s217
          %223 = dma.hbm_to_vmem [thread:$0]  %s216, 512, %s218, %s208, 128, 64, 4
        $region24: #{tpu_custom_call.1} parent=15 // pred_fallthru
          _
        // Predicated region
        $region25: #{tpu_custom_call.1} parent=15 // pred_check
          %p224 = pneg %p104
        $region26: #{tpu_custom_call.1} parent=15 // pred_check_branch
          %226 = sbr.rel (%p224) target = $region28
        $region27: #{tpu_custom_call.1} parent=15 // pred_region
          %p227 = scmp.lt.s32.totalorder %s28, 1
          %s228 = scalar_select %p227, %s28, 1
          %s229 = scalar_lea.vmem %s2, %s228
        $region28: #{tpu_custom_call.1} parent=15 // pred_fallthru
          _
      $region16: #{tpu_custom_call.1} parent=5 // pred_fallthru
        _
      %p230 = scmp.le.s32.totalorder 1, %s20
      %p231 = scmp.lt.s32.totalorder %s20, 5
      %p232 = pnand %p230, %p231
      %p233 = pneg %p232
      // Predicated region
      $region29: #{tpu_custom_call.1} parent=5 // pred_check
        _
      $region30: #{tpu_custom_call.1} parent=5 // pred_check_branch
        %235 = sbr.rel (%p232) target = $region32
      $region31: #{tpu_custom_call.1} parent=5 // pred_region
        %s236 = ssub.s32 %s20, 1
        %s237 = sand.u32 %s45, 1
        %s238 = scalar_lea.sflag [#allocation5], %s237
        %s239 = sand.u32 %s45, 1
        %s240 = smul.addr %s239, 8
        %s241 = scalar_lea.vmem [#allocation4], %s240
        // Predicated region
        $region33: #{tpu_custom_call.1} parent=31 // pred_check
          %p242 = pneg %p58
        $region34: #{tpu_custom_call.1} parent=31 // pred_check_branch
          %244 = sbr.rel (%p242) target = $region36
        $region35: #{tpu_custom_call.1} parent=31 // pred_region
          %245 = dma.done %s238, 128
        $region36: #{tpu_custom_call.1} parent=31 // pred_fallthru
          _
        %s246 = sand.u32 %s71, 1
        %s247 = scalar_lea.sflag [#allocation8], %s246
        %s248 = sand.u32 %s71, 1
        %s249 = smul.addr %s248, 32
        %s250 = scalar_lea.vmem [#allocation7], %s249
        // Predicated region
        $region37: #{tpu_custom_call.1} parent=31 // pred_check
          %p251 = pneg %p84
        $region38: #{tpu_custom_call.1} parent=31 // pred_check_branch
          %253 = sbr.rel (%p251) target = $region40
        $region39: #{tpu_custom_call.1} parent=31 // pred_region
          %254 = dma.done %s247, 512
        $region40: #{tpu_custom_call.1} parent=31 // pred_fallthru
          _
        %s255 = sand.u32 %s45, 1
        %s256 = scalar_lea.sflag [#allocation5], %s255
        %s257 = sand.u32 %s45, 1
        %s258 = smul.addr %s257, 8
        %s259 = scalar_lea.vmem [#allocation4], %s258
        %p260 = pneg %p58
        %p261 = pneg %p55
        %s262 = sand.u32 %s71, 1
        %s263 = scalar_lea.sflag [#allocation8], %s262
        %s264 = sand.u32 %s71, 1
        %s265 = smul.addr %s264, 32
        %s266 = scalar_lea.vmem [#allocation7], %s265
        %p267 = pneg %p84
        %p268 = pneg %p81
        %p269 = scmp.lt.s32.totalorder %s30, 1
        %s270 = scalar_select %p269, %s30, 1
        %s271 = scalar_lea.vmem %s2, %s270
        %p272 = pneg %p110
        %p273 = pneg %p107
        %p274 = pneg %p138
        %p275 = pneg %p135
        %s276 = sand.u32 %s125, 1
        %s277 = scalar_lea.sflag [#allocation6], %s276
        %s278 = sand.u32 %s125, 1
        %s279 = smul.addr %s278, 16
        %s280 = scalar_lea.vmem [#allocation9], %s279
        %p281 = pneg %p164
        %p282 = pneg %p161
        %s283 = smul.u32 2, %s29
        %p284 = scmp.lt.s32.totalorder %s283, 3
        %s285 = scalar_select %p284, %s283, 3
        %s286 = smul.addr %s285, 8
        %s287 = scalar_lea.vmem %s4, %s286
        %s288 = smul.u32 2, %s29
        %p289 = scmp.lt.s32.totalorder %s30, 1
        %s290 = scalar_select %p289, %s30, 1
        %s291 = scalar_lea.vmem %s2, %s290
        %s292 = smul.u32 2, %s29
        %s293 = smul.u32 2, %s29
        %p294 = scmp.lt.s32.totalorder %s293, 3
        %s295 = scalar_select %p294, %s293, 3
        %s296 = smul.addr %s295, 8
        %s297 = scalar_lea.vmem %s4, %s296
        %s298 = smul.u32 2, %s29
        %p300 = scmp.eq.s32.totalorder %s30, 0
        // Predicated region
        $region41: #{tpu_custom_call.1} parent=31 // pred_check
          %p301 = pneg %p300
        $region42: #{tpu_custom_call.1} parent=31 // pred_check_branch
          %303 = sbr.rel (%p301) target = $region44
        $region43: #{tpu_custom_call.1} parent=31 // pred_region
          %vm304 = vcmask 7168
          %305 = vst.msk [vmem:[#allocation2] sm:$0xff] %vm304, -inf
          %306 = vst.msk [vmem:[#allocation2 + $0x8] sm:$0xff] %vm304, -inf
          %307 = vst.msk [vmem:[#allocation3] sm:$0xff] %vm304, 0.0
          %308 = vst.msk [vmem:[#allocation3 + $0x8] sm:$0xff] %vm304, 0.0
        $region44: #{tpu_custom_call.1} parent=31 // pred_fallthru
          _
        %v309 = vld [vmem:[%s241] sm:$0xf]
        %v310 = vld [vmem:[%s241 + $0x4] sm:$0xf]
        %v311 = vld [vmem:[%s250] sm:$0xf]
        %v312 = vld [vmem:[%s250 + $0x4] sm:$0xf]
        %v313 = vld [vmem:[%s250 + $0x8] sm:$0xf]
        %v314 = vld [vmem:[%s250 + $0xc] sm:$0xf]
        %v315 = vld [vmem:[%s250 + $0x10] sm:$0xf]
        %v316 = vld [vmem:[%s250 + $0x14] sm:$0xf]
        %v317 = vld [vmem:[%s250 + $0x18] sm:$0xf]
        %v318 = vld [vmem:[%s250 + $0x1c] sm:$0xf]
        %v319 = vld [vmem:[%s291] sm:$0x1]
        %v321 = vlaneseq
        %v322 = vshrl.u32 %v321, 7
        %v323 = vsub.s32 0, %v322
        %v324 = vrot.slane %v319, %v323
        %v328 = vunpack.c.l.b16 %v309
        %v329 = vunpack.c.l.b16 %v310
        %v330 = vpack.c.b16 %v329, %v328
        %v339 = vunpack.c.l.b16 %v311
        %v340 = vunpack.c.l.b16 %v312
        %v341 = vunpack.c.l.b16 %v313
        %v342 = vunpack.c.l.b16 %v314
        %v343 = vunpack.c.l.b16 %v315
        %v344 = vunpack.c.l.b16 %v316
        %v345 = vunpack.c.l.b16 %v317
        %v346 = vunpack.c.l.b16 %v318
        %v347 = vpack.c.b16 %v340, %v339
        %v348 = vpack.c.b16 %v342, %v341
        %v349 = vpack.c.b16 %v344, %v343
        %v350 = vpack.c.b16 %v346, %v345
        %vm355 = vcmask 523264
        %v357 = vsel %vm355, %v330, 0
        %359 = vmatprep.subr.bf16.mxu0 0
        %360 = vmatpush1.bf16.msra.mxu0 %v347
        %361 = vmatprep.subr.bf16.mxu0 0
        %362 = vmatpush1.bf16.msra.mxu0 %v348
        %363 = vmatprep.subr.bf16.mxu0 0
        %364 = vmatpush1.bf16.msra.mxu0 %v349
        %365 = vmatprep.subr.bf16.mxu0 0
        %366 = vmatpush1.bf16.msra.mxu0 %v350
        %367 = vmatprep.subr.bf16.mxu0 0
        %368 = vmatpush1.bf16.msra.mxu0 0
        %369 = vmatprep.subr.bf16.mxu0 0
        %370 = vmatpush1.bf16.msra.mxu0 0
        %371 = vmatprep.subr.bf16.mxu0 0
        %372 = vmatpush1.bf16.msra.mxu0 0
        %373 = vmatprep.subr.bf16.mxu0 0
        %374 = vmatpush1.bf16.msra.mxu0 0
        %375 = vmatprep.subr.bf16.mxu0 0
        %376 = vmatpush1.bf16.msra.mxu0 0
        %377 = vmatprep.subr.bf16.mxu0 0
        %378 = vmatpush1.bf16.msra.mxu0 0
        %379 = vmatprep.subr.bf16.mxu0 0
        %380 = vmatpush1.bf16.msra.mxu0 0
        %381 = vmatprep.subr.bf16.mxu0 0
        %382 = vmatpush1.bf16.msra.mxu0 0
        %383 = vmatprep.subr.bf16.mxu0 0
        %384 = vmatpush1.bf16.msra.mxu0 0
        %385 = vmatprep.subr.bf16.mxu0 0
        %386 = vmatpush1.bf16.msra.mxu0 0
        %387 = vmatprep.subr.bf16.mxu0 0
        %388 = vmatpush1.bf16.msra.mxu0 0
        %389 = vmatprep.subr.bf16.mxu0 0
        %390 = vmatpush1.bf16.msra.mxu0 0
        %391 = vmatprep.mubr.bf16.mxu0 0
        %392 = vmatmul.mubr.bf16.gmra.mrb[0].mxu0 %v357
        %v393 = vpop.f32.mrb[0].mxu0
        %v394 = vadd.f32 %v324, %v393
        %v395 = vpop.f32.mrb[0].mxu0
        %v396 = vpop.f32.mrb[0].mxu0
        %v397 = vadd.f32 %v324, %v396
        %v398 = vpop.f32.mrb[0].mxu0
        %399 = vdwg.mxu0
        %400 = vst [vmem:[%s280] sm:$0xff] %v394
        %401 = vst [vmem:[%s280 + $0x8] sm:$0xff] %v397
        %v402 = vld [vmem:[#allocation2] sm:$0xff]
        %v403 = vld [vmem:[#allocation2 + $0x8] sm:$0xff]
        %404 = vmax.xlane.f32.xlu0 %v394
        %v405 = vpop.xlane.xlu0 %404
        %406 = vmax.xlane.f32.xlu0 %v397
        %v407 = vpop.xlane.xlu0 %406
        %v408 = vmax.f32 %v402, %v405
        %v409 = vmax.f32 %v403, %v407
        %v410 = vld [vmem:[#allocation3] sm:$0xff]
        %v411 = vld [vmem:[#allocation3 + $0x8] sm:$0xff]
        %v412 = vsub.f32 %v402, %v408
        %v413 = vsub.f32 %v403, %v409
        %v414 = vmul.f32 %v412, 1.442695
        %v415 = vpow.pop %v414
        %v416 = vmul.f32 %v413, 1.442695
        %v417 = vpow.pop %v416
        %v418 = vmul.f32 %v410, %v415
        %v419 = vmul.f32 %v411, %v417
        %421 = vset.pattern.permute.xlu0 0
        %422 = vperm.xlu0 %421, %v408
        %v423 = vpop.permute.xlu0 %422
        %426 = vset.pattern.permute.xlu0 0
        %427 = vperm.xlu0 %426, %v409
        %v428 = vpop.permute.xlu0 %427
        %v430 = vsub.f32 %v394, %v423
        %v431 = vsub.f32 %v397, %v428
        %v432 = vmul.f32 %v430, 1.442695
        %v433 = vpow.pop %v432
        %v434 = vmul.f32 %v431, 1.442695
        %v435 = vpow.pop %v434
        %436 = vadd.xlane.f32.xlu0 %v433
        %v437 = vpop.xlane.xlu0 %436
        %438 = vadd.xlane.f32.xlu0 %v435
        %v439 = vpop.xlane.xlu0 %438
        %v440 = vadd.f32 %v418, %v437
        %v441 = vadd.f32 %v419, %v439
        %vm442 = vcmask 7168
        %443 = vst.msk [vmem:[#allocation3] sm:$0xff] %vm442, %v440
        %444 = vst.msk [vmem:[#allocation3 + $0x8] sm:$0xff] %vm442, %v441
        %445 = vst.msk [vmem:[#allocation2] sm:$0xff] %vm442, %v408
        %446 = vst.msk [vmem:[#allocation2 + $0x8] sm:$0xff] %vm442, %v409
        %p447 = scmp.eq.s32.totalorder %s30, 1
        // Predicated region
        $region45: #{tpu_custom_call.1} parent=31 // pred_check
          %p448 = pneg %p447
        $region46: #{tpu_custom_call.1} parent=31 // pred_check_branch
          %450 = sbr.rel (%p448) target = $region48
        $region47: #{tpu_custom_call.1} parent=31 // pred_region
          %v451 = vld [vmem:[#allocation2] sm:$0xff]
          %v452 = vld [vmem:[#allocation2 + $0x8] sm:$0xff]
          %v453 = vld [vmem:[#allocation3] sm:$0xff]
          %v454 = vld [vmem:[#allocation3 + $0x8] sm:$0xff]
          %v455 = vlog2.pop %v453
          %v456 = vmul.f32 %v455, 0.6931472
          %v457 = vlog2.pop %v454
          %v458 = vmul.f32 %v457, 0.6931472
          %v459 = vadd.f32 %v451, %v456
          %v460 = vadd.f32 %v452, %v458
          %461 = vst.msk [vmem:[%s297] sm:$0xff] %vm442, %v459
          %462 = vst.msk [vmem:[%s297 + $0x8] sm:$0xff] %vm442, %v460
        $region48: #{tpu_custom_call.1} parent=31 // pred_fallthru
          _
        %s463 = sand.u32 %s125, 1
        %s464 = scalar_lea.sflag [#allocation6], %s463
        %s465 = sand.u32 %s125, 1
        %s466 = smul.addr %s465, 16
        %s467 = scalar_lea.vmem [#allocation9], %s466
        %s468 = smul.u32 2, %s29
        %p469 = scmp.lt.s32.totalorder %s468, 3
        %s470 = scalar_select %p469, %s468, 3
        %s471 = smul.addr %s470, 8
        %s472 = scalar_lea.vmem %s4, %s471
        // Predicated region
        $region49: #{tpu_custom_call.1} parent=31 // pred_check
          %p473 = pneg %p135
        $region50: #{tpu_custom_call.1} parent=31 // pred_check_branch
          %475 = sbr.rel (%p473) target = $region52
        $region51: #{tpu_custom_call.1} parent=31 // pred_region
          %s476 = smul.u32 2, %s29
          %s478 = ssub.s32 256, 256
          %479 = vsyncadd %s464, %s478
          %s480 = smul.addr %s476, 2
          %s481 = sadd.s32 %s30, %s480
          %s482 = smul.addr %s481, 128
          %s483 = scalar_lea.hbm %s3, %s482
          %s484 = sshll.u32 %s467, 4
          %s485 = int_to_ptr.vmem [resolvable:$true] %s484
          %490 = dma.vmem_to_hbm [thread:$0]  %s485, 256, %s483, %s464, 128, 256, 8
        $region52: #{tpu_custom_call.1} parent=31 // pred_fallthru
          _
        // Predicated region
        $region53: #{tpu_custom_call.1} parent=31 // pred_check
          %p491 = pneg %p161
        $region54: #{tpu_custom_call.1} parent=31 // pred_check_branch
          %493 = sbr.rel (%p491) target = $region56
        $region55: #{tpu_custom_call.1} parent=31 // pred_region
          %s494 = smul.u32 2, %s29
        $region56: #{tpu_custom_call.1} parent=31 // pred_fallthru
          _
      $region32: #{tpu_custom_call.1} parent=5 // pred_fallthru
        _
      %p495 = scmp.le.s32.totalorder 2, %s20
      // Predicated region
      $region57: #{tpu_custom_call.1} parent=5 // pred_check
        %p496 = pneg %p495
      $region58: #{tpu_custom_call.1} parent=5 // pred_check_branch
        %498 = sbr.rel (%p496) target = $region60
      $region59: #{tpu_custom_call.1} parent=5 // pred_region
        %s499 = ssub.s32 %s20, 2
        // Predicated region
        $region61: #{tpu_custom_call.1} parent=59 // pred_check
          %p500 = pneg %p141
        $region62: #{tpu_custom_call.1} parent=59 // pred_check_branch
          %502 = sbr.rel (%p500) target = $region64
        $region63: #{tpu_custom_call.1} parent=59 // pred_region
          %s503 = sand.u32 %s126, 1
          %s504 = scalar_lea.sflag [#allocation6], %s503
          %s505 = sand.u32 %s126, 1
          %s506 = smul.addr %s505, 16
          %s507 = scalar_lea.vmem [#allocation9], %s506
          %508 = dma.done %s504, 256
        $region64: #{tpu_custom_call.1} parent=59 // pred_fallthru
          _
        // Predicated region
        $region65: #{tpu_custom_call.1} parent=59 // pred_check
          %p509 = pneg %p167
        $region66: #{tpu_custom_call.1} parent=59 // pred_check_branch
          %511 = sbr.rel (%p509) target = $region68
        $region67: #{tpu_custom_call.1} parent=59 // pred_region
          %s512 = smul.u32 2, %s31
          %p513 = scmp.lt.s32.totalorder %s512, 3
          %s514 = scalar_select %p513, %s512, 3
          %s515 = smul.addr %s514, 8
          %s516 = scalar_lea.vmem %s4, %s515
        $region68: #{tpu_custom_call.1} parent=59 // pred_fallthru
          _
      $region60: #{tpu_custom_call.1} parent=5 // pred_fallthru
        _
    $region6: #{tpu_custom_call.1} parent=1 // loop_footer
      %s24 = sadd.s32 1, %s20
    $region7: #{tpu_custom_call.1} parent=1 // loop_footer_branch
      %19 = sbr.rel target = $region3
    $region8: #{tpu_custom_call.1} parent=1 // loop_exit
      _
    %517 = vsyncpa [#allocation5], 1
    %s518 = scalar_lea.sflag [#allocation5], 1
    %519 = vsyncpa %s518, 1
    %520 = vsyncpa [#allocation8], 1
    %s521 = scalar_lea.sflag [#allocation8], 1
    %522 = vsyncpa %s521, 1
    %523 = vsyncpa [#allocation6], 1
    %s524 = scalar_lea.sflag [#allocation6], 1
    %525 = vsyncpa %s524, 1

</llo_original>
